<compile_context>
chip_gen: v7x
topology: tpu7x:2x2x1
jax: 0.10.0
libtpu: 0.0.40
codegen_flags: <defaults>
</compile_context>

<pallas_src>
import numpy as np
import jax
import jax.numpy as jnp
from jax import lax
from jax.experimental import pallas as pl
from jax.experimental.pallas import tpu as pltpu


def _pose_seg_kernel(x_ref, conf_ref, ids_ref):
    # x_ref: (TB, nC, TILE)      (input dtype, possibly bf16)
    # conf_ref: (TB, 1, TILE) f32    ids_ref: (TB, 1, TILE) i32
    x = x_ref[...].astype(jnp.float32)   # upcast once; exp/sum must be f32 (v5e)
    nC = x.shape[1]

    # max(softmax(x)) over classes == 1 / sum(exp(x - max(x)))
    m = jnp.max(x, axis=1, keepdims=True)                       # (TB, 1, TILE)
    s = jnp.sum(jnp.exp(x - m), axis=1, keepdims=True)          # (TB, 1, TILE)
    conf = 1.0 / s                                              # exact divide (1e-5 tol)

    # argmax(softmax(x)) == argmax(x); first index on ties (matches torch.max / argmax)
    cls_idx = lax.broadcasted_iota(jnp.int32, x.shape, 1)       # (TB, nC, TILE)
    ids = jnp.min(jnp.where(x == m, cls_idx, jnp.int32(nC)),
                  axis=1, keepdims=True)

    conf_ref[...] = conf
    ids_ref[...] = ids.astype(jnp.int32)


def _choose_tiles(nB, nC, HW, itemsize):
    """Pick (batch_tile, lane_tile) for blocks of shape (batch_tile, nC, lane_tile)."""
    # Lane tile: largest multiple-of-128 divisor of HW, capped at 8192.
    if HW % 128 == 0:
        tile_hw = 128
        for t in range(min(HW, 8192), 127, -128):
            if HW % t == 0:
                tile_hw = t
                break
    else:
        # TODO(synk): HW not a multiple of 128 -> sub-128-lane block (masked partial
        # stores).  Correct but slow; pad HW to a multiple of 128 upstream if hot.
        tile_hw = HW
    n_hw = HW // tile_hw

    # Batch tile: when one lane tile already covers the whole row, fold several batch
    # images into a grid step (amortizes per-step overhead on small heads).  Keep at
    # least 2 grid steps when nB > 1 so both v7x TensorCores are used.
    tile_b = 1
    if n_hw == 1 and nB > 1:
        budget = 2 * 1024 * 1024                      # bytes per input block
        cap = max(1, budget // max(nC * tile_hw * itemsize, 1))
        for b in range(min(nB // 2, cap), 0, -1):
            if nB % b == 0:
                tile_b = b
                break
    return tile_b, tile_hw


def pose_seg_forward(output):
    """Eval-mode forward of PoseSegLayer.

    output: (nB, nC, nH, nW)  float32 or bfloat16  (NCHW, nA == 1)
    returns (cls_confs, cls_ids), each (nB, nH, nW);
            cls_confs float32, cls_ids int32 (torch returns int64 indices).
    """
    nB, nC, nH, nW = output.shape
    HW = nH * nW
    x = output.reshape(nB, nC, HW)            # keep input dtype (bf16 halves HBM reads)

    tile_b, tile_hw = _choose_tiles(nB, nC, HW, x.dtype.itemsize)
    grid = (nB // tile_b, HW // tile_hw)

    conf3, ids3 = pl.pallas_call(
        _pose_seg_kernel,
        out_shape=(
            jax.ShapeDtypeStruct((nB, 1, HW), jnp.float32),
            jax.ShapeDtypeStruct((nB, 1, HW), jnp.int32),
        ),
        grid_spec=pl.GridSpec(
            grid=grid,
            in_specs=[pl.BlockSpec((tile_b, nC, tile_hw), lambda b, j: (b, 0, j))],
            out_specs=(
                pl.BlockSpec((tile_b, 1, tile_hw), lambda b, j: (b, 0, j)),
                pl.BlockSpec((tile_b, 1, tile_hw), lambda b, j: (b, 0, j)),
            ),
        ),
        compiler_params=pltpu.CompilerParams(
            dimension_semantics=("parallel", "parallel"),
        ),
    )(x)

    cls_confs = conf3.reshape(nB, nH, nW)
    cls_ids = ids3.reshape(nB, nH, nW)
    return cls_confs, cls_ids


def reference_forward(output):
    """Pure-JAX reference of the torch eval branch."""
    nB, nC, nH, nW = output.shape
    cls = output.astype(jnp.float32).reshape(nB, nC, nH * nW)
    cls = cls.transpose(0, 2, 1).reshape(-1, nC)
    p = jax.nn.softmax(cls, axis=1)
    conf = jnp.max(p, axis=1).reshape(nB, nH, nW)
    ids = jnp.argmax(p, axis=1).astype(jnp.int32).reshape(nB, nH, nW)
    return conf, ids


def _check(x):
    conf, ids = pose_seg_forward(x)
    conf = jax.block_until_ready(conf)
    ids = jax.block_until_ready(ids)
    ref_conf, ref_ids = reference_forward(x)
    nB, _, nH, nW = x.shape
    assert conf.shape == (nB, nH, nW) and ids.shape == (nB, nH, nW)
    np.testing.assert_allclose(np.asarray(conf), np.asarray(ref_conf),
                               rtol=1e-5, atol=1e-6)
    np.testing.assert_array_equal(np.asarray(ids), np.asarray(ref_ids))


if __name__ == "__main__":
    # Deterministic "module parameters" (unused in the eval-mode hot path, but
    # initialized to mirror PoseSegLayer.__init__ shapes).
    num_classes = 4
    num_keypoints = 3
    class_weights = np.linspace(1.0, 2.0, num_classes, dtype=np.float32)      # (nC,)
    cpoints = np.arange(num_classes * 3, dtype=np.float32).reshape(num_classes, 3)
    keypoints = np.arange(num_classes * num_keypoints * 3, dtype=np.float32
                          ).reshape(num_classes, num_keypoints, 3) * 0.01
    anchors = [1.0, 1.0]  # num_anchors = 1

    key = jax.random.PRNGKey(0)
    k1, k2, k3 = jax.random.split(key, 3)

    # Main test: NCHW with nA=1 -> channels = nC, batch-tiled path (HW = 256).
    nB, nC, nH, nW = 2, num_classes, 16, 16
    x = jax.random.normal(k1, (nB, nC, nH, nW), dtype=jnp.float32)
    _check(x)

    # bf16 input path (kernel upcasts internally; halves HBM read traffic).
    x_bf16 = jax.random.normal(k2, (nB, nC, nH, nW), dtype=jnp.float32
                               ).astype(jnp.bfloat16)
    _check(x_bf16)

    # Spatially-tiled path (HW = 9216 -> lane tile 4608, 2 grid steps on that axis).
    x_big = jax.random.normal(k3, (1, num_classes, 96, 96), dtype=jnp.float32)
    _check(x_big)

    print("KERNEL_OK")
</pallas_src>

<mosaic_0001>
module attributes {stable_mosaic.version = 11 : i64} {
  func.func @_pose_seg_kernel(%arg0: i32, %arg1: i32, %arg2: memref<1x4x256xf32, #tpu.memory_space<vmem>>, %arg3: memref<1x1x256xf32, #tpu.memory_space<vmem>>, %arg4: memref<1x1x256xi32, #tpu.memory_space<vmem>>) attributes {dimension_semantics = [#tpu.dimension_semantics<parallel>, #tpu.dimension_semantics<parallel>], iteration_bounds = array<i64: 2, 1>, scalar_prefetch = 0 : i64, scratch_operands = 0 : i64, tpu.core_type = #tpu.core_type<tc>, window_params = [{transform_indices = @transform_0, window_bounds = array<i64: 1, 4, 256>}, {transform_indices = @transform_1, window_bounds = array<i64: 1, 1, 256>}, {transform_indices = @transform_2, window_bounds = array<i64: 1, 1, 256>}]} {
    %c0 = arith.constant 0 : index
    %c0_0 = arith.constant 0 : index
    %c0_1 = arith.constant 0 : index
    %0 = vector.load %arg2[%c0, %c0_0, %c0_1] : memref<1x4x256xf32, #tpu.memory_space<vmem>>, vector<1x4x256xf32>
    %cst = arith.constant dense<0xFF800000> : vector<1x256xf32>
    %1 = vector.multi_reduction <maximumf>, %0, %cst [1] : vector<1x4x256xf32> to vector<1x256xf32>
    %2 = vector.shape_cast %1 : vector<1x256xf32> to vector<1x1x256xf32>
    %3 = vector.broadcast %2 : vector<1x1x256xf32> to vector<1x4x256xf32>
    %4 = arith.subf %0, %3 : vector<1x4x256xf32>
    %5 = math.exp %4 : vector<1x4x256xf32>
    %cst_2 = arith.constant dense<0.000000e+00> : vector<1x256xf32>
    %6 = vector.multi_reduction <add>, %5, %cst_2 [1] : vector<1x4x256xf32> to vector<1x256xf32>
    %7 = vector.shape_cast %6 : vector<1x256xf32> to vector<1x1x256xf32>
    %cst_3 = arith.constant 1.000000e+00 : f32
    %8 = vector.broadcast %cst_3 : f32 to vector<1x1x256xf32>
    %9 = arith.divf %8, %7 : vector<1x1x256xf32>
    %10 = tpu.iota {dimensions = array<i32: 1>} : vector<1x4x256xi32>
    %11 = vector.broadcast %2 : vector<1x1x256xf32> to vector<1x4x256xf32>
    %12 = arith.cmpf oeq, %0, %11 : vector<1x4x256xf32>
    %c4_i32 = arith.constant 4 : i32
    %13 = vector.broadcast %c4_i32 : i32 to vector<1x4x256xi32>
    %14 = arith.select %12, %10, %13 : vector<1x4x256xi1>, vector<1x4x256xi32>
    %cst_4 = arith.constant dense<2147483647> : vector<1x256xi32>
    %15 = vector.multi_reduction <minsi>, %14, %cst_4 [1] : vector<1x4x256xi32> to vector<1x256xi32>
    %16 = vector.shape_cast %15 : vector<1x256xi32> to vector<1x1x256xi32>
    %c0_5 = arith.constant 0 : index
    %c0_6 = arith.constant 0 : index
    %c0_7 = arith.constant 0 : index
    %17 = vector.load %arg3[%c0_5, %c0_6, %c0_7] : memref<1x1x256xf32, #tpu.memory_space<vmem>>, vector<1x1x256xf32>
    tpu.vector_store %arg3[%c0_5, %c0_6, %c0_7], %9 {strides = array<i32>} : memref<1x1x256xf32, #tpu.memory_space<vmem>>, vector<1x1x256xf32>,
    %c0_8 = arith.constant 0 : index
    %c0_9 = arith.constant 0 : index
    %c0_10 = arith.constant 0 : index
    %18 = vector.load %arg4[%c0_8, %c0_9, %c0_10] : memref<1x1x256xi32, #tpu.memory_space<vmem>>, vector<1x1x256xi32>
    tpu.vector_store %arg4[%c0_8, %c0_9, %c0_10], %16 {strides = array<i32>} : memref<1x1x256xi32, #tpu.memory_space<vmem>>, vector<1x1x256xi32>,
    return
  }
  func.func @transform_0(%arg0: i32, %arg1: i32) -> (i32, i32, i32) {
    %c0_i32 = arith.constant 0 : i32
    %c0_i32_0 = arith.constant 0 : i32
    return %arg0, %c0_i32, %arg1 : i32, i32, i32
  }
  func.func @transform_1(%arg0: i32, %arg1: i32) -> (i32, i32, i32) {
    %c0_i32 = arith.constant 0 : i32
    %c0_i32_0 = arith.constant 0 : i32
    return %arg0, %c0_i32, %arg1 : i32, i32, i32
  }
  func.func @transform_2(%arg0: i32, %arg1: i32) -> (i32, i32, i32) {
    %c0_i32 = arith.constant 0 : i32
    %c0_i32_0 = arith.constant 0 : i32
    return %arg0, %c0_i32, %arg1 : i32, i32, i32
  }
}

</mosaic_0001>

<llo_original>
// kernel: tpu_custom_call.1
$region0: #{tpu_custom_call.1}
  #allocation0 [shape = 'u32[]', space=smem, size = 0x4, offset = 0x4, fixed_abs, tag = 'smem constant byte address 0x4 - core index']
  #allocation1 [shape = 'u32[144,128]{1,0:T(1,128)}', space=vmem, size = 0x12000, scoped, tag = 'internal scratch']
  %s0 = inlined_call_operand.hbm [shape: f32[2,4,256], index: 0, kind: input, shape index: {}]
  %s1 = inlined_call_operand.hbm [shape: f32[2,1,256], index: 1, kind: output, shape index: {0}]
  %s2 = inlined_call_operand.hbm [shape: s32[2,1,256], index: 2, kind: output, shape index: {1}]
  %3 = xla_tuple %s1, %s2
  %s4 = sld [smem:[#allocation0]]
  $region49: #{tpu_custom_call.1} parent=0
    _
  %s6 = ssub.s32 1, %s4
  %s7 = scalar_select 0, %s6, %s4
  $region1: #{tpu_custom_call.1} parent=0
    #allocation2 [shape = 'u8[8192]{0}', space=vmem, size = 0x2000, scoped, tag = 'input window, operand 0']
    #allocation3 [shape = 's32[2]{0}', space=sflag, size = 0x8, scoped, tag = 'scoped memory for tpu_custom_call.1']
    #allocation4 [shape = 's32[2]{0}', space=sflag, size = 0x8, scoped, tag = 'scoped memory for tpu_custom_call.1']
    #allocation5 [shape = 'u8[2048]{0}', space=vmem, size = 0x800, scoped, tag = 'output window, operand 0']
    #allocation6 [shape = 'u8[2048]{0}', space=vmem, size = 0x800, scoped, tag = 'output window, operand 1']
    #allocation7 [shape = 's32[2]{0}', space=sflag, size = 0x8, scoped, tag = 'scoped memory for tpu_custom_call.1']
    %8 = vsyncpa [#allocation3], 0
    %s9 = scalar_lea.sflag [#allocation3], 1
    %10 = vsyncpa %s9, 0
    %11 = vsyncpa [#allocation4], 0
    %s12 = scalar_lea.sflag [#allocation4], 1
    %13 = vsyncpa %s12, 0
    %14 = vsyncpa [#allocation7], 0
    %s15 = scalar_lea.sflag [#allocation7], 1
    %16 = vsyncpa %s15, 0
    loop: start=0, step=1, limit=4
    $region2: #{tpu_custom_call.1} parent=1 // loop_pre_header
      _
    $region3: #{tpu_custom_call.1} parent=1 // loop_header
      %s18 = sphi 0, %s22
      %p19 = scmp.ge.s32.totalorder %s18, 4
      %s25 = sphi 0, %s37
      %s26 = sphi 0, %s33
      %s27 = sphi 0, %s25
      %s28 = sphi 0, %s26
      %s29 = sphi 0, %s27
      %s30 = sphi 0, %s28
      %s42 = sphi 0, %s44
      %s45 = sphi 0, %s42
      %s46 = sphi 0, %s45
      %s62 = sphi 0, %s46
      %s70 = sphi 0, %s72
      %s73 = sphi 0, %s70
      %s74 = sphi 0, %s73
      %s90 = sphi 0, %s74
      %s98 = sphi 0, %s100
      %s101 = sphi 0, %s98
      %s102 = sphi 0, %s101
      %s118 = sphi 0, %s102
    $region4: #{tpu_custom_call.1} parent=1 // loop_header_branch
      %21 = sbr.rel (%p19) target = $region8
    $region5: #{tpu_custom_call.1} parent=1 // loop_body
      %s23 = ssub.s32 %s18, 1
      %s24 = ssub.s32 %s18, 2
      %s31 = sadd.s32 1, %s26
      %p32 = scmp.ge.s32.totalorder %s31, 1
      %s33 = scalar_select %p32, 0, %s31
      %s34 = sadd.s32 1, %s25
      %s35 = scalar_select %p32, %s34, %s25
      %p36 = scmp.ge.s32.totalorder %s35, 2
      %s37 = scalar_select %p36, 0, %s35
      %s38 = ssub.s32 %s25, %s37
      %s39 = ssub.s32 %s26, %s33
      %s40 = sor.u32 %s38, %s39
      %p41 = scmp.eq.s32.totalorder %s40, 0
      %s43 = sadd.s32 %s42, 1
      %s44 = scalar_select %p41, %s42, %s43
      %p47 = pneg %p41
      %p48 = scmp.eq.s32.totalorder %s18, 1
      %p49 = por %p47, %p48
      %p50 = scmp.ne.s32.totalorder %s42, %s45
      %p51 = scmp.eq.s32.totalorder %s18, 0
      %p52 = por %p50, %p51
      %p53 = scmp.ne.s32.totalorder %s42, %s45
      %p54 = scmp.eq.s32.totalorder %s23, 1
      %p55 = por %p53, %p54
      %p56 = scmp.ne.s32.totalorder %s45, %s46
      %p57 = scmp.eq.s32.totalorder %s23, 0
      %p58 = por %p56, %p57
      %p59 = scmp.ne.s32.totalorder %s45, %s46
      %p60 = scmp.eq.s32.totalorder %s24, 1
      %p61 = por %p59, %p60
      %p63 = scmp.ne.s32.totalorder %s46, %s62
      %p64 = scmp.eq.s32.totalorder %s24, 0
      %p65 = por %p63, %p64
      %s66 = ssub.s32 %s25, %s37
      %s67 = ssub.s32 %s26, %s33
      %s68 = sor.u32 %s66, %s67
      %p69 = scmp.eq.s32.totalorder %s68, 0
      %s71 = sadd.s32 %s70, 1
      %s72 = scalar_select %p69, %s70, %s71
      %p75 = pneg %p69
      %p76 = scmp.eq.s32.totalorder %s18, 1
      %p77 = por %p75, %p76
      %p78 = scmp.ne.s32.totalorder %s70, %s73
      %p79 = scmp.eq.s32.totalorder %s18, 0
      %p80 = por %p78, %p79
      %p81 = scmp.ne.s32.totalorder %s70, %s73
      %p82 = scmp.eq.s32.totalorder %s23, 1
      %p83 = por %p81, %p82
      %p84 = scmp.ne.s32.totalorder %s73, %s74
      %p85 = scmp.eq.s32.totalorder %s23, 0
      %p86 = por %p84, %p85
      %p87 = scmp.ne.s32.totalorder %s73, %s74
      %p88 = scmp.eq.s32.totalorder %s24, 1
      %p89 = por %p87, %p88
      %p91 = scmp.ne.s32.totalorder %s74, %s90
      %p92 = scmp.eq.s32.totalorder %s24, 0
      %p93 = por %p91, %p92
      %s94 = ssub.s32 %s25, %s37
      %s95 = ssub.s32 %s26, %s33
      %s96 = sor.u32 %s94, %s95
      %p97 = scmp.eq.s32.totalorder %s96, 0
      %s99 = sadd.s32 %s98, 1
      %s100 = scalar_select %p97, %s98, %s99
      %p103 = pneg %p97
      %p104 = scmp.eq.s32.totalorder %s18, 1
      %p105 = por %p103, %p104
      %p106 = scmp.ne.s32.totalorder %s98, %s101
      %p107 = scmp.eq.s32.totalorder %s18, 0
      %p108 = por %p106, %p107
      %p109 = scmp.ne.s32.totalorder %s98, %s101
      %p110 = scmp.eq.s32.totalorder %s23, 1
      %p111 = por %p109, %p110
      %p112 = scmp.ne.s32.totalorder %s101, %s102
      %p113 = scmp.eq.s32.totalorder %s23, 0
      %p114 = por %p112, %p113
      %p115 = scmp.ne.s32.totalorder %s101, %s102
      %p116 = scmp.eq.s32.totalorder %s24, 1
      %p117 = por %p115, %p116
      %p119 = scmp.ne.s32.totalorder %s102, %s118
      %p120 = scmp.eq.s32.totalorder %s24, 0
      %p121 = por %p119, %p120
      %p122 = scmp.le.s32.totalorder 1, %s18
      %p123 = scmp.lt.s32.totalorder %s18, 3
      %p124 = pnand %p122, %p123
      %p125 = pneg %p124
      // Predicated region
      $region9: #{tpu_custom_call.1} parent=5 // pred_check
        _
      $region10: #{tpu_custom_call.1} parent=5 // pred_check_branch
        %127 = sbr.rel (%p124) target = $region12
      $region11: #{tpu_custom_call.1} parent=5 // pred_region
        %s128 = ssub.s32 %s18, 1
      $region12: #{tpu_custom_call.1} parent=5 // pred_fallthru
        _
      %p129 = scmp.lt.s32.totalorder %s18, 2
      // Predicated region
      $region13: #{tpu_custom_call.1} parent=5 // pred_check
        %p130 = pneg %p129
      $region14: #{tpu_custom_call.1} parent=5 // pred_check_branch
        %132 = sbr.rel (%p130) target = $region16
      $region15: #{tpu_custom_call.1} parent=5 // pred_region
        // Predicated region
        $region17: #{tpu_custom_call.1} parent=15 // pred_check
          %p133 = pneg %p52
        $region18: #{tpu_custom_call.1} parent=15 // pred_check_branch
          %135 = sbr.rel (%p133) target = $region20
        $region19: #{tpu_custom_call.1} parent=15 // pred_region
          %s136 = sand.u32 %s42, 1
          %s137 = scalar_lea.sflag [#allocation3], %s136
          %s138 = sand.u32 %s42, 1
          %s139 = smul.addr %s138, 8
          %s140 = scalar_lea.vmem [#allocation2], %s139
          %s141 = smul.u32 2, %s26
          %s143 = ssub.s32 128, 128
          %144 = vsyncadd %s137, %s143
          %s145 = smul.addr %s25, 2
          %s146 = sadd.s32 %s141, %s145
          %s147 = smul.addr %s146, 64
          %s148 = scalar_lea.hbm %s0, %s147
          %s150 = sshll.u32 %s140, 4
          %s151 = int_to_ptr.vmem [resolvable:$true] %s150
          %153 = dma.hbm_to_vmem [thread:$0]  %s148, 128, %s151, %s137
        $region20: #{tpu_custom_call.1} parent=15 // pred_fallthru
          _
      $region16: #{tpu_custom_call.1} parent=5 // pred_fallthru
        _
      %p154 = scmp.le.s32.totalorder 1, %s18
      %p155 = scmp.lt.s32.totalorder %s18, 3
      %p156 = pnand %p154, %p155
      %p157 = pneg %p156
      // Predicated region
      $region21: #{tpu_custom_call.1} parent=5 // pred_check
        _
      $region22: #{tpu_custom_call.1} parent=5 // pred_check_branch
        %159 = sbr.rel (%p156) target = $region24
      $region23: #{tpu_custom_call.1} parent=5 // pred_region
        %s160 = ssub.s32 %s18, 1
        %s161 = sand.u32 %s45, 1
        %s162 = scalar_lea.sflag [#allocation3], %s161
        %s163 = sand.u32 %s45, 1
        %s164 = smul.addr %s163, 8
        %s165 = scalar_lea.vmem [#allocation2], %s164
        // Predicated region
        $region25: #{tpu_custom_call.1} parent=23 // pred_check
          %p166 = pneg %p58
        $region26: #{tpu_custom_call.1} parent=23 // pred_check_branch
          %168 = sbr.rel (%p166) target = $region28
        $region27: #{tpu_custom_call.1} parent=23 // pred_region
          %169 = dma.done %s162, 128
        $region28: #{tpu_custom_call.1} parent=23 // pred_fallthru
          _
        %s170 = sand.u32 %s45, 1
        %s171 = scalar_lea.sflag [#allocation3], %s170
        %s172 = sand.u32 %s45, 1
        %s173 = smul.addr %s172, 8
        %s174 = scalar_lea.vmem [#allocation2], %s173
        %p175 = pneg %p58
        %p176 = pneg %p55
        %p177 = pneg %p86
        %p178 = pneg %p83
        %s179 = sand.u32 %s73, 1
        %s180 = scalar_lea.sflag [#allocation4], %s179
        %s181 = sand.u32 %s73, 1
        %s182 = smul.addr %s181, 2
        %s183 = scalar_lea.vmem [#allocation5], %s182
        %p184 = pneg %p114
        %p185 = pneg %p111
        %s186 = sand.u32 %s101, 1
        %s187 = scalar_lea.sflag [#allocation7], %s186
        %s188 = sand.u32 %s101, 1
        %s189 = smul.addr %s188, 2
        %s190 = scalar_lea.vmem [#allocation6], %s189
        %s191 = smul.u32 2, %s28
        %s192 = smul.u32 2, %s28
        %s193 = smul.u32 2, %s28
        %v194 = vld [vmem:[%s165] sm:$0xff]
        %v196 = vcombine.high %v194, %v194
        %vm198 = vcmask 1043456
        %v199 = vsel %vm198, %v194, -inf
        %v200 = vrot.slane %v199, 4
        %v201 = vmax.f32 %v199, %v200
        %v202 = vrot.slane %v201, 2
        %v203 = vmax.f32 %v201, %v202
        %v204 = vrot.slane %v203, 1
        %v205 = vmax.f32 %v203, %v204
        %v206 = vsel %vm198, %v196, -inf
        %v207 = vrot.slane %v206, 4
        %v208 = vmax.f32 %v206, %v207
        %v209 = vrot.slane %v208, 2
        %v210 = vmax.f32 %v208, %v209
        %v211 = vrot.slane %v210, 1
        %v212 = vmax.f32 %v210, %v211
        %v215 = vcombine.low %v205, %v212
        %v217 = vsub.f32 %v194, %v215
        %v218 = vmul.f32 %v217, 1.442695
        %v219 = vpow.pop %v218
        %v221 = vcombine.high %v219, %v219
        %v223 = vsel %vm198, %v219, 0.0
        %v224 = vrot.slane %v223, 4
        %v225 = vadd.f32 %v223, %v224
        %v226 = vrot.slane %v225, 2
        %v227 = vadd.f32 %v225, %v226
        %v228 = vrot.slane %v227, 1
        %v229 = vadd.f32 %v227, %v228
        %v230 = vsel %vm198, %v221, 0.0
        %v231 = vrot.slane %v230, 4
        %v232 = vadd.f32 %v230, %v231
        %v233 = vrot.slane %v232, 2
        %v234 = vadd.f32 %v232, %v233
        %v235 = vrot.slane %v234, 1
        %v236 = vadd.f32 %v234, %v235
        %v237 = vrcp.pop %v229
        %v238 = vmul.f32 1.0, %v237
        %v239 = vrcp.pop %v236
        %v240 = vmul.f32 1.0, %v239
        %v241 = vlaneseq
        %v242 = vshrl.u32 %v241, 7
        %vm243 = vcmp.eq.f32.partialorder %v194, %v215
        %v245 = vunpack.c.l.s4 839922192
        %v246 = vunpack.c.0.s8 %v245
        %v247 = vlaneseq
        %v248 = vshrl.u32 %v247, 7
        %v249 = vsub.s32 %v246, %v248
        %v250 = vrot.slane %v242, %v249
        %v251 = vsel %vm243, %v250, 4
        %v252 = vcombine.high %v251, %v251
        %v253 = vsel %vm198, %v251, 2147483647
        %v254 = vrot.slane %v253, 4
        %vm255 = vcmp.lt.s32.totalorder %v253, %v254
        %v256 = vsel %vm255, %v253, %v254
        %v257 = vrot.slane %v256, 2
        %vm258 = vcmp.lt.s32.totalorder %v256, %v257
        %v259 = vsel %vm258, %v256, %v257
        %v260 = vrot.slane %v259, 1
        %vm261 = vcmp.lt.s32.totalorder %v259, %v260
        %v262 = vsel %vm261, %v259, %v260
        %v263 = vsel %vm198, %v252, 2147483647
        %v264 = vrot.slane %v263, 4
        %vm265 = vcmp.lt.s32.totalorder %v263, %v264
        %v266 = vsel %vm265, %v263, %v264
        %v267 = vrot.slane %v266, 2
        %vm268 = vcmp.lt.s32.totalorder %v266, %v267
        %v269 = vsel %vm268, %v266, %v267
        %v270 = vrot.slane %v269, 1
        %vm271 = vcmp.lt.s32.totalorder %v269, %v270
        %v272 = vsel %vm271, %v269, %v270
        %v275 = vcombine.low %v238, %v240
        %v277 = vunpack.c.l.s4 1966171168
        %v278 = vunpack.c.0.s8 %v277
        %v279 = vlaneseq
        %v280 = vshrl.u32 %v279, 7
        %v281 = vsub.s32 %v278, %v280
        %v282 = vrot.slane %v275, %v281
        %v284 = vunpack.c.l.s4 1966171168
        %v285 = vunpack.c.0.s8 %v284
        %v286 = vlaneseq
        %v287 = vshrl.u32 %v286, 7
        %v288 = vsub.s32 %v285, %v287
        %v289 = vrot.slane %v282, %v288
        %v291 = vlaneseq
        %vm292 = vcmp.ge.s32.totalorder %v291, 0
        %vm293 = vcmp.lt.s32.totalorder %v291, 256
        %vm294 = vmand %vm292, %vm293
        %295 = vst.msk [vmem:[%s183] sm:$0x3] %vm294, %v289
        %v296 = vcombine.low %v262, %v272
        %v298 = vunpack.c.l.s4 1966171168
        %v299 = vunpack.c.0.s8 %v298
        %v300 = vlaneseq
        %v301 = vshrl.u32 %v300, 7
        %v302 = vsub.s32 %v299, %v301
        %v303 = vrot.slane %v296, %v302
        %v305 = vunpack.c.l.s4 1966171168
        %v306 = vunpack.c.0.s8 %v305
        %v307 = vlaneseq
        %v308 = vshrl.u32 %v307, 7
        %v309 = vsub.s32 %v306, %v308
        %v310 = vrot.slane %v303, %v309
        %311 = vst.msk [vmem:[%s190] sm:$0x3] %vm294, %v310
        %s312 = sand.u32 %s73, 1
        %s313 = scalar_lea.sflag [#allocation4], %s312
        %s314 = sand.u32 %s73, 1
        %s315 = smul.addr %s314, 2
        %s316 = scalar_lea.vmem [#allocation5], %s315
        %s317 = sand.u32 %s101, 1
        %s318 = scalar_lea.sflag [#allocation7], %s317
        %s319 = sand.u32 %s101, 1
        %s320 = smul.addr %s319, 2
        %s321 = scalar_lea.vmem [#allocation6], %s320
        // Predicated region
        $region29: #{tpu_custom_call.1} parent=23 // pred_check
          %p322 = pneg %p83
        $region30: #{tpu_custom_call.1} parent=23 // pred_check_branch
          %324 = sbr.rel (%p322) target = $region32
        $region31: #{tpu_custom_call.1} parent=23 // pred_region
          %s325 = smul.u32 2, %s28
          %s327 = ssub.s32 32, 32
          %328 = vsyncadd %s313, %s327
          %s329 = smul.addr %s27, 2
          %s330 = sadd.s32 %s325, %s329
          %s331 = smul.addr %s330, 16
          %s332 = scalar_lea.hbm %s1, %s331
          %s334 = sshll.u32 %s316, 4
          %s335 = int_to_ptr.vmem [resolvable:$true] %s334
          %337 = dma.vmem_to_hbm [thread:$0]  %s335, 32, %s332, %s313
        $region32: #{tpu_custom_call.1} parent=23 // pred_fallthru
          _
        // Predicated region
        $region33: #{tpu_custom_call.1} parent=23 // pred_check
          %p338 = pneg %p111
        $region34: #{tpu_custom_call.1} parent=23 // pred_check_branch
          %340 = sbr.rel (%p338) target = $region36
        $region35: #{tpu_custom_call.1} parent=23 // pred_region
          %s341 = smul.u32 2, %s28
          %s343 = ssub.s32 32, 32
          %344 = vsyncadd %s318, %s343
          %s345 = smul.addr %s27, 2
          %s346 = sadd.s32 %s341, %s345
          %s347 = smul.addr %s346, 16
          %s348 = scalar_lea.hbm %s2, %s347
          %s350 = sshll.u32 %s321, 4
          %s351 = int_to_ptr.vmem [resolvable:$true] %s350
          %353 = dma.vmem_to_hbm [thread:$0]  %s351, 32, %s348, %s318
        $region36: #{tpu_custom_call.1} parent=23 // pred_fallthru
          _
      $region24: #{tpu_custom_call.1} parent=5 // pred_fallthru
        _
      %p354 = scmp.le.s32.totalorder 2, %s18
      // Predicated region
      $region37: #{tpu_custom_call.1} parent=5 // pred_check
        %p355 = pneg %p354
      $region38: #{tpu_custom_call.1} parent=5 // pred_check_branch
        %357 = sbr.rel (%p355) target = $region40
      $region39: #{tpu_custom_call.1} parent=5 // pred_region
        %s358 = ssub.s32 %s18, 2
        // Predicated region
        $region41: #{tpu_custom_call.1} parent=39 // pred_check
          %p359 = pneg %p89
        $region42: #{tpu_custom_call.1} parent=39 // pred_check_branch
          %361 = sbr.rel (%p359) target = $region44
        $region43: #{tpu_custom_call.1} parent=39 // pred_region
          %s362 = sand.u32 %s74, 1
          %s363 = scalar_lea.sflag [#allocation4], %s362
          %s364 = sand.u32 %s74, 1
          %s365 = smul.addr %s364, 2
          %s366 = scalar_lea.vmem [#allocation5], %s365
          %367 = dma.done %s363, 32
        $region44: #{tpu_custom_call.1} parent=39 // pred_fallthru
          _
        // Predicated region
        $region45: #{tpu_custom_call.1} parent=39 // pred_check
          %p368 = pneg %p117
        $region46: #{tpu_custom_call.1} parent=39 // pred_check_branch
          %370 = sbr.rel (%p368) target = $region48
        $region47: #{tpu_custom_call.1} parent=39 // pred_region
          %s371 = sand.u32 %s102, 1
          %s372 = scalar_lea.sflag [#allocation7], %s371
          %s373 = sand.u32 %s102, 1
          %s374 = smul.addr %s373, 2
          %s375 = scalar_lea.vmem [#allocation6], %s374
          %376 = dma.done %s372, 32
        $region48: #{tpu_custom_call.1} parent=39 // pred_fallthru
          _
      $region40: #{tpu_custom_call.1} parent=5 // pred_fallthru
        _
    $region6: #{tpu_custom_call.1} parent=1 // loop_footer
      %s22 = sadd.s32 1, %s18
    $region7: #{tpu_custom_call.1} parent=1 // loop_footer_branch
      %17 = sbr.rel target = $region3
    $region8: #{tpu_custom_call.1} parent=1 // loop_exit
      _
    %377 = vsyncpa [#allocation3], 1
    %s378 = scalar_lea.sflag [#allocation3], 1
    %379 = vsyncpa %s378, 1
    %380 = vsyncpa [#allocation4], 1
    %s381 = scalar_lea.sflag [#allocation4], 1
    %382 = vsyncpa %s381, 1
    %383 = vsyncpa [#allocation7], 1
    %s384 = scalar_lea.sflag [#allocation7], 1
    %385 = vsyncpa %s384, 1

</llo_original>
